<compile_context>
chip_gen: v7x
topology: tpu7x:2x2x1
jax: 0.10.0
libtpu: 0.0.40
codegen_flags: <defaults>
</compile_context>

<pallas_src>
import jax
import jax.numpy as jnp
from jax.experimental import pallas as pl
from jax.experimental.pallas import tpu as pltpu


def qnetwork_kernel(xt_ref, w1_ref, b1_ref, w2_ref, b2_ref, out_ref):
    """One batch tile: out^T[A, Bt] = W2 @ relu(W1 @ x^T + b1) + b2."""
    xt = xt_ref[...]            # [S, Bt]   (batch on lanes)
    w1 = w1_ref[...]            # [H, S]    (torch nn.Linear layout: [out, in])
    s_dim = w1.shape[1]

    if s_dim <= 8:
        # Tiny contraction: unrolled VPU multiply-adds, f32 accumulation.
        acc = b1_ref[...].astype(jnp.float32)                       # [H, 1]
        for k in range(s_dim):
            acc = acc + (w1[:, k:k + 1].astype(jnp.float32)
                         * xt[k:k + 1, :].astype(jnp.float32))      # -> [H, Bt]
        ht = acc
    else:
        ht = jnp.dot(w1, xt, preferred_element_type=jnp.float32) + b1_ref[...]

    ht = jnp.maximum(ht, 0.0)                                       # ReLU (f32)

    w2 = w2_ref[...]                                                # [A, H]
    qt = jnp.dot(w2, ht.astype(w2.dtype),
                 preferred_element_type=jnp.float32) + b2_ref[...]  # [A, Bt]
    out_ref[...] = qt.astype(out_ref.dtype)


def qnetwork_forward(x, w1, b1, w2, b2, *,
                     compute_dtype=jnp.float32, block_b=1024):
    """Q(x) for x:[B,S]; params in torch nn.Linear layout
    (w1:[H,S], b1:[H], w2:[A,H], b2:[A]). Returns [B, A] float32."""
    batch, state_dim = x.shape
    hidden_dim = w1.shape[0]
    action_dim = w2.shape[0]

    # Batch-on-lanes layout + optional low-precision storage for the streamed
    # operand and the weights. Biases stay f32 (added post-matmul).
    xt = x.T.astype(compute_dtype)                        # [S, B]
    w1c = w1.astype(compute_dtype)                        # [H, S]
    w2c = w2.astype(compute_dtype)                        # [A, H]
    b1c = b1.reshape(hidden_dim, 1).astype(jnp.float32)   # [H, 1]
    b2c = b2.reshape(action_dim, 1).astype(jnp.float32)   # [A, 1]

    if batch <= block_b:
        bt = batch                      # single tile == full lane dim (exempt)
        padded = batch
    else:
        bt = max(128, (block_b // 128) * 128)   # keep lane-dim tile /128
        padded = ((batch + bt - 1) // bt) * bt
        if padded != batch:
            xt = jnp.pad(xt, ((0, 0), (0, padded - batch)))
    num_tiles = padded // bt

    itemsize = jnp.dtype(compute_dtype).itemsize
    flops = 2 * padded * (state_dim * hidden_dim + hidden_dim * action_dim)
    bytes_accessed = ((padded * state_dim
                       + hidden_dim * state_dim
                       + action_dim * hidden_dim) * itemsize
                      + (hidden_dim + action_dim + padded * action_dim) * 4)

    qt = pl.pallas_call(
        qnetwork_kernel,
        out_shape=jax.ShapeDtypeStruct((action_dim, padded), jnp.float32),
        grid=(num_tiles,),
        in_specs=[
            pl.BlockSpec((state_dim, bt), lambda i: (0, i)),            # x^T tile
            pl.BlockSpec((hidden_dim, state_dim), lambda i: (0, 0)),    # W1 resident
            pl.BlockSpec((hidden_dim, 1), lambda i: (0, 0)),            # b1 resident
            pl.BlockSpec((action_dim, hidden_dim), lambda i: (0, 0)),   # W2 resident
            pl.BlockSpec((action_dim, 1), lambda i: (0, 0)),            # b2 resident
        ],
        out_specs=pl.BlockSpec((action_dim, bt), lambda i: (0, i)),
        compiler_params=pltpu.CompilerParams(
            dimension_semantics=("parallel",)),
        cost_estimate=pl.CostEstimate(flops=flops, transcendentals=0,
                                      bytes_accessed=bytes_accessed),
    )(xt, w1c, b1c, w2c, b2c)

    return qt[:, :batch].T                                 # [B, A] float32


def init_qnetwork_params(key, state_dim, hidden_dim, action_dim):
    """torch.nn.Linear default init, in torch layout (weight [out, in])."""
    k1, k2, k3, k4 = jax.random.split(key, 4)
    bound1 = 1.0 / (state_dim ** 0.5)
    bound2 = 1.0 / (hidden_dim ** 0.5)
    w1 = jax.random.uniform(k1, (hidden_dim, state_dim), jnp.float32, -bound1, bound1)
    b1 = jax.random.uniform(k2, (hidden_dim,), jnp.float32, -bound1, bound1)
    w2 = jax.random.uniform(k3, (action_dim, hidden_dim), jnp.float32, -bound2, bound2)
    b2 = jax.random.uniform(k4, (action_dim,), jnp.float32, -bound2, bound2)
    return w1, b1, w2, b2


def reference_forward(x, w1, b1, w2, b2):
    h = jnp.maximum(x @ w1.T + b1, 0.0)
    return h @ w2.T + b2


if __name__ == "__main__":
    # Small shapes consistent with a DQN Q-network (CartPole-ish).
    batch, state_dim, hidden_dim, action_dim = 2, 4, 32, 2

    key = jax.random.PRNGKey(0)
    kx, kp = jax.random.split(key)
    x = jax.random.normal(kx, (batch, state_dim), jnp.float32)
    params = init_qnetwork_params(kp, state_dim, hidden_dim, action_dim)

    # 1) f32, single-tile path (primary small-shape check).
    q = qnetwork_forward(x, *params)
    jax.block_until_ready(q)
    q_ref = reference_forward(x, *params)
    assert q.shape == (batch, action_dim)
    assert jnp.allclose(q, q_ref, atol=1e-4, rtol=1e-4)

    # 2) bf16 inputs/weights with f32 accumulation (looser tolerance).
    q_bf16 = qnetwork_forward(x, *params, compute_dtype=jnp.bfloat16)
    jax.block_until_ready(q_bf16)
    assert jnp.allclose(q_bf16, q_ref, atol=1e-1, rtol=1e-1)

    # 3) Multi-tile grid path (padded batch, MXU fc1 branch, wider state).
    kb, kq = jax.random.split(kx)
    sd2, hd2, ad2, batch2 = 12, 48, 3, 300
    xb = jax.random.normal(kb, (batch2, sd2), jnp.float32)
    params2 = init_qnetwork_params(kq, sd2, hd2, ad2)
    qb = qnetwork_forward(xb, *params2, block_b=128)
    jax.block_until_ready(qb)
    qb_ref = reference_forward(xb, *params2)
    assert qb.shape == (batch2, ad2)
    assert jnp.allclose(qb, qb_ref, atol=1e-4, rtol=1e-4)

    print("KERNEL_OK")
</pallas_src>

<mosaic_0001>
module attributes {stable_mosaic.version = 11 : i64} {
  func.func @qnetwork_kernel(%arg0: i32, %arg1: memref<4x2xf32, #tpu.memory_space<vmem>>, %arg2: memref<32x4xf32, #tpu.memory_space<vmem>>, %arg3: memref<32x1xf32, #tpu.memory_space<vmem>>, %arg4: memref<2x32xf32, #tpu.memory_space<vmem>>, %arg5: memref<2x1xf32, #tpu.memory_space<vmem>>, %arg6: memref<2x2xf32, #tpu.memory_space<vmem>>) attributes {dimension_semantics = [#tpu.dimension_semantics<parallel>], iteration_bounds = array<i64: 1>, scalar_prefetch = 0 : i64, scratch_operands = 0 : i64, tpu.core_type = #tpu.core_type<tc>, window_params = [{transform_indices = @transform_0, window_bounds = array<i64: 4, 2>}, {pipeline_mode = #tpu.pipeline_mode<synchronous>, transform_indices = @transform_1, window_bounds = array<i64: 32, 4>}, {pipeline_mode = #tpu.pipeline_mode<synchronous>, transform_indices = @transform_2, window_bounds = array<i64: 32, 1>}, {pipeline_mode = #tpu.pipeline_mode<synchronous>, transform_indices = @transform_3, window_bounds = array<i64: 2, 32>}, {pipeline_mode = #tpu.pipeline_mode<synchronous>, transform_indices = @transform_4, window_bounds = array<i64: 2, 1>}, {transform_indices = @transform_5, window_bounds = array<i64: 2, 2>}]} {
    %c0 = arith.constant 0 : index
    %c0_0 = arith.constant 0 : index
    %0 = vector.load %arg1[%c0, %c0_0] : memref<4x2xf32, #tpu.memory_space<vmem>>, vector<4x2xf32>
    %c0_1 = arith.constant 0 : index
    %c0_2 = arith.constant 0 : index
    %1 = vector.load %arg2[%c0_1, %c0_2] : memref<32x4xf32, #tpu.memory_space<vmem>>, vector<32x4xf32>
    %c0_3 = arith.constant 0 : index
    %c0_4 = arith.constant 0 : index
    %2 = vector.load %arg3[%c0_3, %c0_4] : memref<32x1xf32, #tpu.memory_space<vmem>>, vector<32x1xf32>
    %3 = vector.extract_strided_slice %1 {offsets = [0, 0], sizes = [32, 1], strides = [1, 1]} : vector<32x4xf32> to vector<32x1xf32>
    %4 = vector.extract_strided_slice %0 {offsets = [0, 0], sizes = [1, 2], strides = [1, 1]} : vector<4x2xf32> to vector<1x2xf32>
    %5 = vector.broadcast %3 : vector<32x1xf32> to vector<32x2xf32>
    %6 = vector.broadcast %4 : vector<1x2xf32> to vector<32x2xf32>
    %7 = arith.mulf %5, %6 : vector<32x2xf32>
    %8 = vector.broadcast %2 : vector<32x1xf32> to vector<32x2xf32>
    %9 = arith.addf %8, %7 : vector<32x2xf32>
    %10 = vector.extract_strided_slice %1 {offsets = [0, 1], sizes = [32, 1], strides = [1, 1]} : vector<32x4xf32> to vector<32x1xf32>
    %11 = vector.extract_strided_slice %0 {offsets = [1, 0], sizes = [1, 2], strides = [1, 1]} : vector<4x2xf32> to vector<1x2xf32>
    %12 = vector.broadcast %10 : vector<32x1xf32> to vector<32x2xf32>
    %13 = vector.broadcast %11 : vector<1x2xf32> to vector<32x2xf32>
    %14 = arith.mulf %12, %13 : vector<32x2xf32>
    %15 = arith.addf %9, %14 : vector<32x2xf32>
    %16 = vector.extract_strided_slice %1 {offsets = [0, 2], sizes = [32, 1], strides = [1, 1]} : vector<32x4xf32> to vector<32x1xf32>
    %17 = vector.extract_strided_slice %0 {offsets = [2, 0], sizes = [1, 2], strides = [1, 1]} : vector<4x2xf32> to vector<1x2xf32>
    %18 = vector.broadcast %16 : vector<32x1xf32> to vector<32x2xf32>
    %19 = vector.broadcast %17 : vector<1x2xf32> to vector<32x2xf32>
    %20 = arith.mulf %18, %19 : vector<32x2xf32>
    %21 = arith.addf %15, %20 : vector<32x2xf32>
    %22 = vector.extract_strided_slice %1 {offsets = [0, 3], sizes = [32, 1], strides = [1, 1]} : vector<32x4xf32> to vector<32x1xf32>
    %23 = vector.extract_strided_slice %0 {offsets = [3, 0], sizes = [1, 2], strides = [1, 1]} : vector<4x2xf32> to vector<1x2xf32>
    %24 = vector.broadcast %22 : vector<32x1xf32> to vector<32x2xf32>
    %25 = vector.broadcast %23 : vector<1x2xf32> to vector<32x2xf32>
    %26 = arith.mulf %24, %25 : vector<32x2xf32>
    %27 = arith.addf %21, %26 : vector<32x2xf32>
    %cst = arith.constant 0.000000e+00 : f32
    %28 = vector.broadcast %cst : f32 to vector<32x2xf32>
    %29 = arith.maximumf %27, %28 : vector<32x2xf32>
    %c0_5 = arith.constant 0 : index
    %c0_6 = arith.constant 0 : index
    %30 = vector.load %arg4[%c0_5, %c0_6] : memref<2x32xf32, #tpu.memory_space<vmem>>, vector<2x32xf32>
    %cst_7 = arith.constant dense<0.000000e+00> : vector<2x2xf32>
    %31 = tpu.matmul %30, %29, %cst_7 {dimension_numbers = #tpu.dot_dimension_numbers<[1], [0], [0], [1], [0, 0, 1, 1], [], []>} : vector<2x32xf32>, vector<32x2xf32>, vector<2x2xf32> -> vector<2x2xf32>
    %c0_8 = arith.constant 0 : index
    %c0_9 = arith.constant 0 : index
    %32 = vector.load %arg5[%c0_8, %c0_9] : memref<2x1xf32, #tpu.memory_space<vmem>>, vector<2x1xf32>
    %33 = vector.broadcast %32 : vector<2x1xf32> to vector<2x2xf32>
    %34 = arith.addf %31, %33 : vector<2x2xf32>
    %c0_10 = arith.constant 0 : index
    %c0_11 = arith.constant 0 : index
    %35 = vector.load %arg6[%c0_10, %c0_11] : memref<2x2xf32, #tpu.memory_space<vmem>>, vector<2x2xf32>
    tpu.vector_store %arg6[%c0_10, %c0_11], %34 {strides = array<i32>} : memref<2x2xf32, #tpu.memory_space<vmem>>, vector<2x2xf32>,
    return
  }
  func.func @transform_0(%arg0: i32) -> (i32, i32) {
    %c0_i32 = arith.constant 0 : i32
    %c0_i32_0 = arith.constant 0 : i32
    return %c0_i32, %arg0 : i32, i32
  }
  func.func @transform_1(%arg0: i32) -> (i32, i32) {
    %c0_i32 = arith.constant 0 : i32
    %c0_i32_0 = arith.constant 0 : i32
    %c0_i32_1 = arith.constant 0 : i32
    return %c0_i32, %c0_i32_0 : i32, i32
  }
  func.func @transform_2(%arg0: i32) -> (i32, i32) {
    %c0_i32 = arith.constant 0 : i32
    %c0_i32_0 = arith.constant 0 : i32
    %c0_i32_1 = arith.constant 0 : i32
    return %c0_i32, %c0_i32_0 : i32, i32
  }
  func.func @transform_3(%arg0: i32) -> (i32, i32) {
    %c0_i32 = arith.constant 0 : i32
    %c0_i32_0 = arith.constant 0 : i32
    %c0_i32_1 = arith.constant 0 : i32
    return %c0_i32, %c0_i32_0 : i32, i32
  }
  func.func @transform_4(%arg0: i32) -> (i32, i32) {
    %c0_i32 = arith.constant 0 : i32
    %c0_i32_0 = arith.constant 0 : i32
    %c0_i32_1 = arith.constant 0 : i32
    return %c0_i32, %c0_i32_0 : i32, i32
  }
  func.func @transform_5(%arg0: i32) -> (i32, i32) {
    %c0_i32 = arith.constant 0 : i32
    %c0_i32_0 = arith.constant 0 : i32
    return %c0_i32, %arg0 : i32, i32
  }
}

</mosaic_0001>

<llo_original>
// kernel: tpu_custom_call.1
$region0: #{tpu_custom_call.1}
  #allocation0 [shape = 'u32[]', space=smem, size = 0x4, offset = 0x4, fixed_abs, tag = 'smem constant byte address 0x4 - core index']
  #allocation1 [shape = 'u32[144,128]{1,0:T(1,128)}', space=vmem, size = 0x12000, scoped, tag = 'internal scratch']
  %s0 = inlined_call_operand.vmem [shape: f32[4,2], index: 0, kind: input, shape index: {}]
  %s1 = inlined_call_operand.vmem [shape: f32[32,4], index: 1, kind: input, shape index: {}]
  %s2 = inlined_call_operand.vmem [shape: f32[32,1], index: 2, kind: input, shape index: {}]
  %s3 = inlined_call_operand.vmem [shape: f32[2,32], index: 3, kind: input, shape index: {}]
  %s4 = inlined_call_operand.vmem [shape: f32[2,1], index: 4, kind: input, shape index: {}]
  %s5 = inlined_call_operand.hbm [shape: f32[2,2], index: 5, kind: output, shape index: {}]
  %s6 = sld [smem:[#allocation0]]
  $region30: #{tpu_custom_call.1} parent=0
    _
  %s8 = ssub.s32 1, %s6
  %s9 = scalar_select 0, %s8, %s6
  $region1: #{tpu_custom_call.1} parent=0
    #allocation2 [shape = 'u8[1024]{0}', space=vmem, size = 0x400, scoped, tag = 'output window, operand 0, single buffered']
    #allocation3 [shape = 's32[1]{0}', space=sflag, size = 0x4, scoped, tag = 'scoped memory for tpu_custom_call.1']
    %10 = vsyncpa [#allocation3], 0
    // Predicated region
    $region2: #{tpu_custom_call.1} parent=1 // pred_check
      _
    $region3: #{tpu_custom_call.1} parent=1 // pred_check_branch
      %12 = sbr.rel (0) target = $region5
    $region4: #{tpu_custom_call.1} parent=1 // pred_region
      _
    $region5: #{tpu_custom_call.1} parent=1 // pred_fallthru
      _
    // Predicated region
    $region6: #{tpu_custom_call.1} parent=1 // pred_check
      _
    $region7: #{tpu_custom_call.1} parent=1 // pred_check_branch
      %14 = sbr.rel (0) target = $region9
    $region8: #{tpu_custom_call.1} parent=1 // pred_region
      _
    $region9: #{tpu_custom_call.1} parent=1 // pred_fallthru
      _
    // Predicated region
    $region10: #{tpu_custom_call.1} parent=1 // pred_check
      _
    $region11: #{tpu_custom_call.1} parent=1 // pred_check_branch
      %16 = sbr.rel (0) target = $region13
    $region12: #{tpu_custom_call.1} parent=1 // pred_region
      _
    $region13: #{tpu_custom_call.1} parent=1 // pred_fallthru
      _
    // Predicated region
    $region14: #{tpu_custom_call.1} parent=1 // pred_check
      _
    $region15: #{tpu_custom_call.1} parent=1 // pred_check_branch
      %18 = sbr.rel (0) target = $region17
    $region16: #{tpu_custom_call.1} parent=1 // pred_region
      _
    $region17: #{tpu_custom_call.1} parent=1 // pred_fallthru
      _
    // Predicated region
    $region18: #{tpu_custom_call.1} parent=1 // pred_check
      _
    $region19: #{tpu_custom_call.1} parent=1 // pred_check_branch
      %20 = sbr.rel (0) target = $region21
    $region20: #{tpu_custom_call.1} parent=1 // pred_region
      _
    $region21: #{tpu_custom_call.1} parent=1 // pred_fallthru
      _
    %v21 = vld [vmem:[%s0] sm:$0xf]
    %v22 = vld [vmem:[%s1] sm:$0xff]
    %v23 = vld [vmem:[%s1 + $0x8] sm:$0xff]
    %v24 = vld [vmem:[%s1 + $0x10] sm:$0xff]
    %v25 = vld [vmem:[%s1 + $0x18] sm:$0xff]
    %v26 = vld [vmem:[%s2] sm:$0xff]
    %v27 = vld [vmem:[%s2 + $0x8] sm:$0xff]
    %v28 = vld [vmem:[%s2 + $0x10] sm:$0xff]
    %v29 = vld [vmem:[%s2 + $0x18] sm:$0xff]
    %31 = vset.pattern.permute.xlu0 0
    %32 = vperm.xlu0 %31, %v22
    %v33 = vpop.permute.xlu0 %32
    %36 = vset.pattern.permute.xlu0 0
    %37 = vperm.xlu0 %36, %v23
    %v38 = vpop.permute.xlu0 %37
    %41 = vset.pattern.permute.xlu0 0
    %42 = vperm.xlu0 %41, %v24
    %v43 = vpop.permute.xlu0 %42
    %46 = vset.pattern.permute.xlu0 0
    %47 = vperm.xlu0 %46, %v25
    %v48 = vpop.permute.xlu0 %47
    %v50 = vlaneseq
    %v51 = vshrl.u32 %v50, 7
    %v52 = vsub.s32 0, %v51
    %v53 = vrot.slane %v21, %v52
    %v54 = vmul.f32 %v33, %v53
    %v55 = vmul.f32 %v38, %v53
    %v56 = vmul.f32 %v43, %v53
    %v57 = vmul.f32 %v48, %v53
    %59 = vset.pattern.permute.xlu0 0
    %60 = vperm.xlu0 %59, %v26
    %v61 = vpop.permute.xlu0 %60
    %64 = vset.pattern.permute.xlu0 0
    %65 = vperm.xlu0 %64, %v27
    %v66 = vpop.permute.xlu0 %65
    %69 = vset.pattern.permute.xlu0 0
    %70 = vperm.xlu0 %69, %v28
    %v71 = vpop.permute.xlu0 %70
    %74 = vset.pattern.permute.xlu0 0
    %75 = vperm.xlu0 %74, %v29
    %v76 = vpop.permute.xlu0 %75
    %v78 = vadd.f32 %v61, %v54
    %v79 = vadd.f32 %v66, %v55
    %v80 = vadd.f32 %v71, %v56
    %v81 = vadd.f32 %v76, %v57
    %82 = vset.pattern.permute.xlu0 1
    %83 = vperm.xlu0 %82, %v22
    %v84 = vpop.permute.xlu0 %83
    %86 = vset.pattern.permute.xlu0 1
    %87 = vperm.xlu0 %86, %v23
    %v88 = vpop.permute.xlu0 %87
    %90 = vset.pattern.permute.xlu0 1
    %91 = vperm.xlu0 %90, %v24
    %v92 = vpop.permute.xlu0 %91
    %94 = vset.pattern.permute.xlu0 1
    %95 = vperm.xlu0 %94, %v25
    %v96 = vpop.permute.xlu0 %95
    %v98 = vlaneseq
    %v99 = vshrl.u32 %v98, 7
    %v100 = vsub.s32 1, %v99
    %v101 = vrot.slane %v21, %v100
    %v102 = vmul.f32 %v84, %v101
    %v103 = vmul.f32 %v88, %v101
    %v104 = vmul.f32 %v92, %v101
    %v105 = vmul.f32 %v96, %v101
    %v106 = vadd.f32 %v78, %v102
    %v107 = vadd.f32 %v79, %v103
    %v108 = vadd.f32 %v80, %v104
    %v109 = vadd.f32 %v81, %v105
    %110 = vset.pattern.permute.xlu0 2
    %111 = vperm.xlu0 %110, %v22
    %v112 = vpop.permute.xlu0 %111
    %114 = vset.pattern.permute.xlu0 2
    %115 = vperm.xlu0 %114, %v23
    %v116 = vpop.permute.xlu0 %115
    %118 = vset.pattern.permute.xlu0 2
    %119 = vperm.xlu0 %118, %v24
    %v120 = vpop.permute.xlu0 %119
    %122 = vset.pattern.permute.xlu0 2
    %123 = vperm.xlu0 %122, %v25
    %v124 = vpop.permute.xlu0 %123
    %v126 = vlaneseq
    %v127 = vshrl.u32 %v126, 7
    %v128 = vsub.s32 2, %v127
    %v129 = vrot.slane %v21, %v128
    %v130 = vmul.f32 %v112, %v129
    %v131 = vmul.f32 %v116, %v129
    %v132 = vmul.f32 %v120, %v129
    %v133 = vmul.f32 %v124, %v129
    %v134 = vadd.f32 %v106, %v130
    %v135 = vadd.f32 %v107, %v131
    %v136 = vadd.f32 %v108, %v132
    %v137 = vadd.f32 %v109, %v133
    %138 = vset.pattern.permute.xlu0 3
    %139 = vperm.xlu0 %138, %v22
    %v140 = vpop.permute.xlu0 %139
    %142 = vset.pattern.permute.xlu0 3
    %143 = vperm.xlu0 %142, %v23
    %v144 = vpop.permute.xlu0 %143
    %146 = vset.pattern.permute.xlu0 3
    %147 = vperm.xlu0 %146, %v24
    %v148 = vpop.permute.xlu0 %147
    %150 = vset.pattern.permute.xlu0 3
    %151 = vperm.xlu0 %150, %v25
    %v152 = vpop.permute.xlu0 %151
    %v154 = vlaneseq
    %v155 = vshrl.u32 %v154, 7
    %v156 = vsub.s32 3, %v155
    %v157 = vrot.slane %v21, %v156
    %v158 = vmul.f32 %v140, %v157
    %v159 = vmul.f32 %v144, %v157
    %v160 = vmul.f32 %v148, %v157
    %v161 = vmul.f32 %v152, %v157
    %v162 = vadd.f32 %v134, %v158
    %v163 = vadd.f32 %v135, %v159
    %v164 = vadd.f32 %v136, %v160
    %v165 = vadd.f32 %v137, %v161
    %v166 = vmax.f32 %v162, 0.0
    %v167 = vmax.f32 %v163, 0.0
    %v168 = vmax.f32 %v164, 0.0
    %v169 = vmax.f32 %v165, 0.0
    %v170 = vld [vmem:[%s3] sm:$0x3]
    %v171 = vld [vmem:[%s4] sm:$0x3]
    %173 = vset.pattern.permute.xlu0 0
    %174 = vperm.xlu0 %173, %v171
    %v175 = vpop.permute.xlu0 %174
    %vm177 = vcmask 261120
    %v179 = vsel %vm177, %v170, 0
    %181 = vmatprep.subr.mxu0 0.0
    %182 = vmatpush1.msra.mxu0 %v166
    %183 = vmatprep.subr.mxu0 0.0
    %184 = vmatpush1.msra.mxu0 %v167
    %185 = vmatprep.subr.mxu0 0.0
    %186 = vmatpush1.msra.mxu0 %v168
    %187 = vmatprep.subr.mxu0 0.0
    %188 = vmatpush1.msra.mxu0 %v169
    %189 = vmatprep.subr.mxu0 0.0
    %190 = vmatpush1.msra.mxu0 0.0
    %191 = vmatprep.subr.mxu0 0.0
    %192 = vmatpush1.msra.mxu0 0.0
    %193 = vmatprep.subr.mxu0 0.0
    %194 = vmatpush1.msra.mxu0 0.0
    %195 = vmatprep.subr.mxu0 0.0
    %196 = vmatpush1.msra.mxu0 0.0
    %197 = vmatprep.subr.mxu0 0.0
    %198 = vmatpush1.msra.mxu0 0.0
    %199 = vmatprep.subr.mxu0 0.0
    %200 = vmatpush1.msra.mxu0 0.0
    %201 = vmatprep.subr.mxu0 0.0
    %202 = vmatpush1.msra.mxu0 0.0
    %203 = vmatprep.subr.mxu0 0.0
    %204 = vmatpush1.msra.mxu0 0.0
    %205 = vmatprep.subr.mxu0 0.0
    %206 = vmatpush1.msra.mxu0 0.0
    %207 = vmatprep.subr.mxu0 0.0
    %208 = vmatpush1.msra.mxu0 0.0
    %209 = vmatprep.subr.mxu0 0.0
    %210 = vmatpush1.msra.mxu0 0.0
    %211 = vmatprep.subr.mxu0 0.0
    %212 = vmatpush1.msra.mxu0 0.0
    %213 = vmatprep.subr.mxu0 0.0
    %214 = vmatpush1.msra.mxu0 0.0
    %215 = vmatprep.subr.mxu0 0.0
    %216 = vmatpush1.msra.mxu0 0.0
    %217 = vmatprep.subr.mxu0 0.0
    %218 = vmatpush1.msra.mxu0 0.0
    %219 = vmatprep.subr.mxu0 0.0
    %220 = vmatpush1.msra.mxu0 0.0
    %221 = vmatprep.subr.mxu0 0.0
    %222 = vmatpush1.msra.mxu0 0.0
    %223 = vmatprep.subr.mxu0 0.0
    %224 = vmatpush1.msra.mxu0 0.0
    %225 = vmatprep.subr.mxu0 0.0
    %226 = vmatpush1.msra.mxu0 0.0
    %227 = vmatprep.subr.mxu0 0.0
    %228 = vmatpush1.msra.mxu0 0.0
    %229 = vmatprep.subr.mxu0 0.0
    %230 = vmatpush1.msra.mxu0 0.0
    %231 = vmatprep.subr.mxu0 0.0
    %232 = vmatpush1.msra.mxu0 0.0
    %233 = vmatprep.subr.mxu0 0.0
    %234 = vmatpush1.msra.mxu0 0.0
    %235 = vmatprep.subr.mxu0 0.0
    %236 = vmatpush1.msra.mxu0 0.0
    %237 = vmatprep.subr.mxu0 0.0
    %238 = vmatpush1.msra.mxu0 0.0
    %239 = vmatprep.subr.mxu0 0.0
    %240 = vmatpush1.msra.mxu0 0.0
    %241 = vmatprep.subr.mxu0 0.0
    %242 = vmatpush1.msra.mxu0 0.0
    %243 = vmatprep.subr.mxu0 0.0
    %244 = vmatpush1.msra.mxu0 0.0
    %245 = vmatprep.mubr.f32.mxu0 0.0
    %246 = vmatmul.mubr.f32.gmra.mrb[0].mxu0 %v179
    %v247 = vpop.f32.mrb[0].mxu0
    %v248 = vadd.f32 %v175, %v247
    %v249 = vpop.f32.mrb[0].mxu0
    %250 = vdwg.mxu0
    %vm251 = vcmask 9216
    %252 = vst.msk [vmem:[#allocation2] sm:$0x3] %vm251, %v248
    // Predicated region
    $region22: #{tpu_custom_call.1} parent=1 // pred_check
      _
    $region23: #{tpu_custom_call.1} parent=1 // pred_check_branch
      %254 = sbr.rel (0) target = $region25
    $region24: #{tpu_custom_call.1} parent=1 // pred_region
      %s256 = ssub.s32 32, 32
      %257 = vsyncadd [#allocation3], %s256
      %s259 = sshll.u32 [#allocation2], 4
      %s260 = int_to_ptr.vmem [resolvable:$true] %s259
      %262 = dma.vmem_to_hbm [thread:$0]  %s260, 32, %s5, [#allocation3]
    $region25: #{tpu_custom_call.1} parent=1 // pred_fallthru
      _
    // Predicated region
    $region26: #{tpu_custom_call.1} parent=1 // pred_check
      _
    $region27: #{tpu_custom_call.1} parent=1 // pred_check_branch
      %264 = sbr.rel (0) target = $region29
    $region28: #{tpu_custom_call.1} parent=1 // pred_region
      %265 = dma.done [#allocation3], 32
    $region29: #{tpu_custom_call.1} parent=1 // pred_fallthru
      _
    %266 = vsyncpa [#allocation3], 1

</llo_original>
